<compile_context>
chip_gen: v7x
topology: tpu7x:2x2x1
jax: 0.10.0
libtpu: 0.0.40
codegen_flags: <defaults>
</compile_context>

<pallas_src>
from math import prod

import numpy as np
import jax
import jax.numpy as jnp
from jax.experimental import pallas as pl
from jax.experimental.pallas import tpu as pltpu

LANE = 128


def round_up(x, m):
    return ((x + m - 1) // m) * m


# ---------------------------------------------------------------------------
# Pallas kernel: fused masked MLP.  Masks are pre-folded into the weights, so
# each hidden layer is  h = relu(h @ W + b)  with an un-activated last layer.
# Grid = (batch tiles, last-layer output-column tiles).
# ---------------------------------------------------------------------------
def make_made_kernel(num_hidden, compute_dtype=jnp.bfloat16):
    def kernel(*refs):
        x_ref = refs[0]
        out_ref = refs[-2]
        h_ref = refs[-1]                      # VMEM scratch: (TB, K_pad) bf16
        j = pl.program_id(1)

        # Hidden stack runs once per batch tile (innermost axis j resets to 0
        # at every new batch tile); result is parked in VMEM and reused for
        # every output-column slab.
        @pl.when(j == 0)
        def _():
            h = x_ref[...].astype(compute_dtype)
            r = 1
            for _ in range(num_hidden):
                w, b = refs[r][...], refs[r + 1][...]
                r += 2
                a = jnp.dot(h, w, preferred_element_type=jnp.float32) + b
                h = jnp.maximum(a, 0.0).astype(compute_dtype)
            h_ref[...] = h

        w_last = refs[1 + 2 * num_hidden][...]   # (K_pad, TN) slab
        b_last = refs[2 + 2 * num_hidden][...]   # (1, TN) slab
        out_ref[...] = (
            jnp.dot(h_ref[...], w_last, preferred_element_type=jnp.float32)
            + b_last
        ).astype(out_ref.dtype)

    return kernel


# ---------------------------------------------------------------------------
# Mask construction: exact port of MADE._create_masks (one_hot=False path).
# torch.randint(low, high) has an exclusive high bound, same as
# np.random.Generator.integers.
# ---------------------------------------------------------------------------
def create_masks(nin, d, hidden_sizes, ordering, rng):
    L = len(hidden_sizes)
    masks = [None] * (L + 1)
    m = {-1: ordering}
    for l in range(L):
        K = hidden_sizes[l]
        m[l] = rng.integers(low=int(m[l - 1].min()), high=nin - 1, size=(K,))
        masks[l] = m[l - 1].reshape(-1, 1) <= m[l].reshape(1, -1)   # (fan_in, fan_out)
    masks[L] = m[L - 1].reshape(-1, 1) < ordering.reshape(1, -1)    # (hidden[-1], nin)
    masks[L] = np.repeat(masks[L], d, axis=1)                       # repeat_interleave(d, dim=1)
    return masks


# ---------------------------------------------------------------------------
# Deterministic parameter init (PyTorch nn.Linear default: U(-1/sqrt(fan_in),
# +1/sqrt(fan_in)) for both weight and bias), stored as (fan_in, fan_out).
# ---------------------------------------------------------------------------
def init_params(key, sizes):
    params = []
    for fan_in, fan_out in zip(sizes[:-1], sizes[1:]):
        key, kw, kb = jax.random.split(key, 3)
        bound = 1.0 / np.sqrt(fan_in)
        w = jax.random.uniform(kw, (fan_in, fan_out), jnp.float32, -bound, bound)
        b = jax.random.uniform(kb, (1, fan_out), jnp.float32, -bound, bound)
        params.append((w, b))
    return params


# ---------------------------------------------------------------------------
# One-time (init) parameter preparation for the kernel:
#   1. fuse masks into the weights (mask * W),
#   2. permute the output layer's columns to d-major order (folds the (0,2,1)
#      permute of the module into column order),
#   3. zero-pad hidden/output feature dims to multiples of 128 lanes,
#   4. store weights in bf16 (biases stay f32).
# Math is unchanged (padded columns have zero weights and biases).
# ---------------------------------------------------------------------------
def prepare_kernel_params(params, masks, d, nin, hidden_sizes,
                          weight_dtype=jnp.bfloat16):
    nout = d * nin
    L = len(hidden_sizes)
    # new output column k = di * nin + ni  <-  old column ni * d + di
    perm = np.arange(nin * d).reshape(nin, d).T.ravel()

    fused = []
    for l, (w, b) in enumerate(params):
        wm = np.asarray(w) * np.asarray(masks[l], dtype=np.float32)
        bb = np.asarray(b)
        if l == L:  # output layer: fold the permute into column order
            wm = wm[:, perm]
            bb = bb[:, perm]
        fused.append((wm, bb))

    in_dims = [nin] + [round_up(h, LANE) for h in hidden_sizes]
    out_dims = [round_up(h, LANE) for h in hidden_sizes] + [round_up(nout, LANE)]

    padded = []
    for (wm, bb), fi, fo in zip(fused, in_dims, out_dims):
        wp = np.zeros((fi, fo), np.float32)
        wp[: wm.shape[0], : wm.shape[1]] = wm
        bp = np.zeros((1, fo), np.float32)
        bp[:, : bb.shape[1]] = bb
        padded.append((jnp.asarray(wp, dtype=weight_dtype),
                       jnp.asarray(bp, dtype=jnp.float32)))
    return padded


# ---------------------------------------------------------------------------
# Tile-size selection.
# ---------------------------------------------------------------------------
def _pick_tb(B, target=512):
    """Largest multiple of 8 <= target that divides round_up(B, 8); for
    B >= 128 guarantee at least 2 batch tiles so v7x's second TensorCore gets
    work (a single extra ~0.35us grid step on 1-TC chips)."""
    Bp8 = round_up(B, 8)

    def largest_divisor(cap):
        t = min(cap, Bp8)
        t -= t % 8
        while t >= 8:
            if Bp8 % t == 0:
                return t
            t -= 8
        return 8

    tb = largest_divisor(target)
    if Bp8 // tb == 1 and B >= 128:
        tb = largest_divisor(Bp8 // 2)
    return tb


def _pick_tn(nout_p):
    for cand in (512, 256, 128):
        if nout_p >= cand and nout_p % cand == 0:
            return cand
    return nout_p


# ---------------------------------------------------------------------------
# Wrapper: batch- and N-tiled fused Pallas MLP.  Output columns are already
# d-major, so post-processing is just a slice (drop lane padding) + reshape.
# ---------------------------------------------------------------------------
def made_forward(x, kparams, d, input_shape, *, tb=None, tn=None,
                 interpret=False):
    B = x.shape[0]
    nin = int(prod(input_shape))
    nout = d * nin
    num_hidden = len(kparams) - 1
    w_last, b_last = kparams[-1]
    K_pad = int(w_last.shape[0])
    nout_p = int(w_last.shape[1])

    inp = x.reshape(B, nin).astype(jnp.float32)

    if tb is None:
        tb = _pick_tb(B)
    else:
        tb = max(8, round_up(min(tb, round_up(B, 8)), 8))
    Bp = round_up(B, tb)
    if Bp != B:
        # TODO(synk): handle the ragged last batch tile with an in-kernel row
        # mask instead of padding (extra HBM round trip of the input).
        inp = jnp.pad(inp, ((0, Bp - B), (0, 0)))

    if tn is None or nout_p % tn != 0:
        tn = _pick_tn(nout_p)
    tn = min(tn, nout_p)

    kernel = make_made_kernel(num_hidden)

    def nbytes(a):
        return int(a.size) * int(a.dtype.itemsize)

    # VMEM budget: double-buffered x/out tiles and last-layer slabs, hidden
    # weights (budgeted at 2x so the fallback path also fits), h scratch.
    hidden_bytes = sum(nbytes(w) + nbytes(b) for w, b in kparams[:-1])
    est = (2 * tb * nin * 4
           + 2 * tb * tn * 4
           + 2 * (K_pad * tn * int(w_last.dtype.itemsize) + tn * 4)
           + tb * K_pad * 2
           + 2 * hidden_bytes)
    try:
        vmem_cap = int(pltpu.get_tpu_info().vmem_capacity_bytes)
    except Exception:
        vmem_cap = 64 << 20              # conservative: v7x per-core VMEM
    vmem_limit = int(max(min(2 * est + (4 << 20), int(0.75 * vmem_cap)),
                         8 << 20))

    flops = 2 * Bp * sum(int(w.shape[0]) * int(w.shape[1]) for w, _ in kparams)
    bytes_accessed = (Bp * nin * 4 + Bp * nout_p * 4
                      + sum(nbytes(w) + nbytes(b) for w, b in kparams))
    cost = pl.CostEstimate(flops=int(flops), transcendentals=0,
                           bytes_accessed=int(bytes_accessed))

    def _run(single_buffer_weights):
        wmode = pl.Buffered(1) if single_buffer_weights else None
        flat_args = [inp]
        in_specs = [pl.BlockSpec((tb, nin), lambda i, j: (i, 0))]
        for w, b in kparams[:-1]:
            flat_args += [w, b]
            if wmode is None:
                in_specs += [pl.BlockSpec(w.shape, lambda i, j: (0, 0)),
                             pl.BlockSpec(b.shape, lambda i, j: (0, 0))]
            else:
                in_specs += [
                    pl.BlockSpec(w.shape, lambda i, j: (0, 0),
                                 pipeline_mode=wmode),
                    pl.BlockSpec(b.shape, lambda i, j: (0, 0),
                                 pipeline_mode=wmode)]
        flat_args += [w_last, b_last]
        in_specs += [pl.BlockSpec((K_pad, tn), lambda i, j: (0, j)),
                     pl.BlockSpec((1, tn), lambda i, j: (0, j))]

        return pl.pallas_call(
            kernel,
            out_shape=jax.ShapeDtypeStruct((Bp, nout_p), jnp.float32),
            grid=(Bp // tb, nout_p // tn),
            in_specs=in_specs,
            out_specs=pl.BlockSpec((tb, tn), lambda i, j: (i, j)),
            scratch_shapes=[pltpu.VMEM((tb, K_pad), jnp.bfloat16)],
            compiler_params=pltpu.CompilerParams(
                dimension_semantics=("parallel", "arbitrary"),
                vmem_limit_bytes=vmem_limit),
            cost_estimate=cost,
            interpret=interpret,
        )(*flat_args)

    try:
        out_p = jax.block_until_ready(_run(True))
    except Exception:
        # pl.Buffered(1) rejected by this JAX/Mosaic build -> default
        # double-buffered weights (same math, more VMEM).
        out_p = _run(False)

    logits = out_p[:B, :nout].reshape(B, d, *input_shape)
    return logits


# ---------------------------------------------------------------------------
# Pure-JAX references of the original module math (for correctness checks).
# weight_dtype=bf16 mirrors the kernel's arithmetic exactly (bf16 operands,
# f32 accumulation); weight_dtype=f32 is the original full-precision module.
# ---------------------------------------------------------------------------
def made_forward_ref(x, params, masks, d, input_shape,
                     weight_dtype=jnp.float32):
    B = x.shape[0]
    nin = int(prod(input_shape))
    h = x.reshape(B, nin).astype(jnp.float32)
    L = len(params) - 1
    for l in range(L):
        w, b = params[l]
        wm = (jnp.asarray(masks[l], jnp.float32) * w).astype(weight_dtype)
        h = jnp.dot(h.astype(weight_dtype), wm,
                    preferred_element_type=jnp.float32) + b
        h = jnp.maximum(h, 0.0)
    w, b = params[-1]
    wm = (jnp.asarray(masks[-1], jnp.float32) * w).astype(weight_dtype)
    out = jnp.dot(h.astype(weight_dtype), wm,
                  preferred_element_type=jnp.float32) + b
    out = out.reshape(B, nin, d)
    return jnp.transpose(out, (0, 2, 1)).reshape(B, d, *input_shape)


if __name__ == "__main__":
    # Small configuration consistent with the module's forward pass.
    B = 64
    input_shape = (16,)       # D = 16
    d = 4                     # discrete values per dimension
    hidden_sizes = [32, 32]
    nin = int(prod(input_shape))

    # Natural ordering, masks built with a fixed numpy RNG (deterministic).
    ordering = np.arange(nin)
    masks_np = create_masks(nin, d, hidden_sizes, ordering,
                            np.random.default_rng(0))

    # Parameters (one_hot=False path): sizes = [nin, *hidden_sizes, d*nin]
    sizes = [nin] + hidden_sizes + [d * nin]
    params = init_params(jax.random.PRNGKey(0), sizes)

    # Fold masks into weights, permute the output layer, pad to 128 lanes,
    # cast weights to bf16.
    kparams = prepare_kernel_params(params, masks_np, d, nin, hidden_sizes)

    # Discrete input values in {0, ..., d-1}.
    x = jax.random.randint(jax.random.PRNGKey(0), (B, nin), 0, d).astype(jnp.float32)

    # Auto tile selection -> tb=64 (single, MXU-filled batch tile), tn=128.
    logits = made_forward(x, kparams, d, input_shape)
    logits = jax.block_until_ready(logits)

    # Shape check.
    assert logits.shape == (B, d) + input_shape, logits.shape

    # Kernel-mechanics check: identical bf16-weight / f32-accumulate math.
    ref_bf16 = made_forward_ref(x, params, masks_np, d, input_shape,
                                weight_dtype=jnp.bfloat16)
    np.testing.assert_allclose(np.asarray(logits), np.asarray(ref_bf16),
                               rtol=2e-3, atol=2e-3)

    # Module-semantics check against the full-f32 reference (loose tolerance:
    # difference is only the bf16 quantization of mask-fused weights).
    ref_f32 = made_forward_ref(x, params, masks_np, d, input_shape,
                               weight_dtype=jnp.float32)
    np.testing.assert_allclose(np.asarray(logits), np.asarray(ref_f32),
                               rtol=0.1, atol=0.15)

    print("KERNEL_OK")
</pallas_src>

<mosaic_0001>
module attributes {stable_mosaic.version = 11 : i64} {
  func.func @kernel(%arg0: i32, %arg1: i32, %arg2: memref<64x16xf32, #tpu.memory_space<vmem>>, %arg3: memref<16x128xbf16, #tpu.memory_space<vmem>>, %arg4: memref<1x128xf32, #tpu.memory_space<vmem>>, %arg5: memref<128x128xbf16, #tpu.memory_space<vmem>>, %arg6: memref<1x128xf32, #tpu.memory_space<vmem>>, %arg7: memref<128x128xbf16, #tpu.memory_space<vmem>>, %arg8: memref<1x128xf32, #tpu.memory_space<vmem>>, %arg9: memref<64x128xf32, #tpu.memory_space<vmem>>, %arg10: memref<64x128xbf16, #tpu.memory_space<vmem>>) attributes {dimension_semantics = [#tpu.dimension_semantics<parallel>, #tpu.dimension_semantics<arbitrary>], iteration_bounds = array<i64: 1, 1>, scalar_prefetch = 0 : i64, scratch_operands = 1 : i64, tpu.core_type = #tpu.core_type<tc>, window_params = [{transform_indices = @transform_0, window_bounds = array<i64: 64, 16>}, {pipeline_mode = #tpu.pipeline_mode<synchronous>, transform_indices = @transform_1, window_bounds = array<i64: 16, 128>}, {pipeline_mode = #tpu.pipeline_mode<synchronous>, transform_indices = @transform_2, window_bounds = array<i64: 1, 128>}, {pipeline_mode = #tpu.pipeline_mode<synchronous>, transform_indices = @transform_3, window_bounds = array<i64: 128, 128>}, {pipeline_mode = #tpu.pipeline_mode<synchronous>, transform_indices = @transform_4, window_bounds = array<i64: 1, 128>}, {transform_indices = @transform_5, window_bounds = array<i64: 128, 128>}, {transform_indices = @transform_6, window_bounds = array<i64: 1, 128>}, {transform_indices = @transform_7, window_bounds = array<i64: 64, 128>}]} {
    %c0_i32 = arith.constant 0 : i32
    %0 = arith.cmpi eq, %arg1, %c0_i32 : i32
    %1 = arith.extui %0 : i1 to i32
    %c0_i32_0 = arith.constant 0 : i32
    %2 = arith.cmpi ne, %1, %c0_i32_0 : i32
    scf.if %2 {
      %c0_8 = arith.constant 0 : index
      %c0_9 = arith.constant 0 : index
      %10 = vector.load %arg2[%c0_8, %c0_9] : memref<64x16xf32, #tpu.memory_space<vmem>>, vector<64x16xf32>
      %11 = arith.truncf %10 : vector<64x16xf32> to vector<64x16xbf16>
      %c0_10 = arith.constant 0 : index
      %c0_11 = arith.constant 0 : index
      %12 = vector.load %arg3[%c0_10, %c0_11] : memref<16x128xbf16, #tpu.memory_space<vmem>>, vector<16x128xbf16>
      %c0_12 = arith.constant 0 : index
      %c0_13 = arith.constant 0 : index
      %13 = vector.load %arg4[%c0_12, %c0_13] : memref<1x128xf32, #tpu.memory_space<vmem>>, vector<1x128xf32>
      %cst_14 = arith.constant dense<0.000000e+00> : vector<64x128xf32>
      %14 = tpu.matmul %11, %12, %cst_14 {dimension_numbers = #tpu.dot_dimension_numbers<[1], [0], [0], [1], [0, 0, 1, 1], [], []>} : vector<64x16xbf16>, vector<16x128xbf16>, vector<64x128xf32> -> vector<64x128xf32>
      %15 = vector.broadcast %13 : vector<1x128xf32> to vector<64x128xf32>
      %16 = arith.addf %14, %15 : vector<64x128xf32>
      %cst_15 = arith.constant 0.000000e+00 : f32
      %17 = vector.broadcast %cst_15 : f32 to vector<64x128xf32>
      %18 = arith.maximumf %16, %17 : vector<64x128xf32>
      %19 = arith.truncf %18 : vector<64x128xf32> to vector<64x128xbf16>
      %c0_16 = arith.constant 0 : index
      %c0_17 = arith.constant 0 : index
      %20 = vector.load %arg5[%c0_16, %c0_17] : memref<128x128xbf16, #tpu.memory_space<vmem>>, vector<128x128xbf16>
      %c0_18 = arith.constant 0 : index
      %c0_19 = arith.constant 0 : index
      %21 = vector.load %arg6[%c0_18, %c0_19] : memref<1x128xf32, #tpu.memory_space<vmem>>, vector<1x128xf32>
      %cst_20 = arith.constant dense<0.000000e+00> : vector<64x128xf32>
      %22 = tpu.matmul %19, %20, %cst_20 {dimension_numbers = #tpu.dot_dimension_numbers<[1], [0], [0], [1], [0, 0, 1, 1], [], []>} : vector<64x128xbf16>, vector<128x128xbf16>, vector<64x128xf32> -> vector<64x128xf32>
      %23 = vector.broadcast %21 : vector<1x128xf32> to vector<64x128xf32>
      %24 = arith.addf %22, %23 : vector<64x128xf32>
      %cst_21 = arith.constant 0.000000e+00 : f32
      %25 = vector.broadcast %cst_21 : f32 to vector<64x128xf32>
      %26 = arith.maximumf %24, %25 : vector<64x128xf32>
      %27 = arith.truncf %26 : vector<64x128xf32> to vector<64x128xbf16>
      %c0_22 = arith.constant 0 : index
      %c0_23 = arith.constant 0 : index
      %28 = vector.load %arg10[%c0_22, %c0_23] : memref<64x128xbf16, #tpu.memory_space<vmem>>, vector<64x128xbf16>
      tpu.vector_store %arg10[%c0_22, %c0_23], %27 {strides = array<i32>} : memref<64x128xbf16, #tpu.memory_space<vmem>>, vector<64x128xbf16>,
    } else {
    }
    %c0 = arith.constant 0 : index
    %c0_1 = arith.constant 0 : index
    %3 = vector.load %arg7[%c0, %c0_1] : memref<128x128xbf16, #tpu.memory_space<vmem>>, vector<128x128xbf16>
    %c0_2 = arith.constant 0 : index
    %c0_3 = arith.constant 0 : index
    %4 = vector.load %arg8[%c0_2, %c0_3] : memref<1x128xf32, #tpu.memory_space<vmem>>, vector<1x128xf32>
    %c0_4 = arith.constant 0 : index
    %c0_5 = arith.constant 0 : index
    %5 = vector.load %arg10[%c0_4, %c0_5] : memref<64x128xbf16, #tpu.memory_space<vmem>>, vector<64x128xbf16>
    %cst = arith.constant dense<0.000000e+00> : vector<64x128xf32>
    %6 = tpu.matmul %5, %3, %cst {dimension_numbers = #tpu.dot_dimension_numbers<[1], [0], [0], [1], [0, 0, 1, 1], [], []>} : vector<64x128xbf16>, vector<128x128xbf16>, vector<64x128xf32> -> vector<64x128xf32>
    %7 = vector.broadcast %4 : vector<1x128xf32> to vector<64x128xf32>
    %8 = arith.addf %6, %7 : vector<64x128xf32>
    %c0_6 = arith.constant 0 : index
    %c0_7 = arith.constant 0 : index
    %9 = vector.load %arg9[%c0_6, %c0_7] : memref<64x128xf32, #tpu.memory_space<vmem>>, vector<64x128xf32>
    tpu.vector_store %arg9[%c0_6, %c0_7], %8 {strides = array<i32>} : memref<64x128xf32, #tpu.memory_space<vmem>>, vector<64x128xf32>,
    return
  }
  func.func @transform_0(%arg0: i32, %arg1: i32) -> (i32, i32) {
    %c0_i32 = arith.constant 0 : i32
    %c0_i32_0 = arith.constant 0 : i32
    return %arg0, %c0_i32 : i32, i32
  }
  func.func @transform_1(%arg0: i32, %arg1: i32) -> (i32, i32) {
    %c0_i32 = arith.constant 0 : i32
    %c0_i32_0 = arith.constant 0 : i32
    %c0_i32_1 = arith.constant 0 : i32
    return %c0_i32, %c0_i32_0 : i32, i32
  }
  func.func @transform_2(%arg0: i32, %arg1: i32) -> (i32, i32) {
    %c0_i32 = arith.constant 0 : i32
    %c0_i32_0 = arith.constant 0 : i32
    %c0_i32_1 = arith.constant 0 : i32
    return %c0_i32, %c0_i32_0 : i32, i32
  }
  func.func @transform_3(%arg0: i32, %arg1: i32) -> (i32, i32) {
    %c0_i32 = arith.constant 0 : i32
    %c0_i32_0 = arith.constant 0 : i32
    %c0_i32_1 = arith.constant 0 : i32
    return %c0_i32, %c0_i32_0 : i32, i32
  }
  func.func @transform_4(%arg0: i32, %arg1: i32) -> (i32, i32) {
    %c0_i32 = arith.constant 0 : i32
    %c0_i32_0 = arith.constant 0 : i32
    %c0_i32_1 = arith.constant 0 : i32
    return %c0_i32, %c0_i32_0 : i32, i32
  }
  func.func @transform_5(%arg0: i32, %arg1: i32) -> (i32, i32) {
    %c0_i32 = arith.constant 0 : i32
    %c0_i32_0 = arith.constant 0 : i32
    return %c0_i32, %arg1 : i32, i32
  }
  func.func @transform_6(%arg0: i32, %arg1: i32) -> (i32, i32) {
    %c0_i32 = arith.constant 0 : i32
    %c0_i32_0 = arith.constant 0 : i32
    return %c0_i32, %arg1 : i32, i32
  }
  func.func @transform_7(%arg0: i32, %arg1: i32) -> (i32, i32) {
    %c0_i32 = arith.constant 0 : i32
    return %arg0, %arg1 : i32, i32
  }
}

module attributes {stable_mosaic.version = 11 : i64} {
  func.func @kernel(%arg0: i32, %arg1: i32, %arg2: memref<64x16xf32, #tpu.memory_space<vmem>>, %arg3: memref<16x128xbf16, #tpu.memory_space<vmem>>, %arg4: memref<1x128xf32, #tpu.memory_space<vmem>>, %arg5: memref<128x128xbf16, #tpu.memory_space<vmem>>, %arg6: memref<1x128xf32, #tpu.memory_space<vmem>>, %arg7: memref<128x128xbf16, #tpu.memory_space<vmem>>, %arg8: memref<1x128xf32, #tpu.memory_space<vmem>>, %arg9: memref<64x128xf32, #tpu.memory_space<vmem>>, %arg10: memref<64x128xbf16, #tpu.memory_space<vmem>>) attributes {dimension_semantics = [#tpu.dimension_semantics<parallel>, #tpu.dimension_semantics<arbitrary>], iteration_bounds = array<i64: 1, 1>, scalar_prefetch = 0 : i64, scratch_operands = 1 : i64, tpu.core_type = #tpu.core_type<tc>, window_params = [{transform_indices = @transform_0, window_bounds = array<i64: 64, 16>}, {pipeline_mode = #tpu.pipeline_mode<synchronous>, transform_indices = @transform_1, window_bounds = array<i64: 16, 128>}, {pipeline_mode = #tpu.pipeline_mode<synchronous>, transform_indices = @transform_2, window_bounds = array<i64: 1, 128>}, {pipeline_mode = #tpu.pipeline_mode<synchronous>, transform_indices = @transform_3, window_bounds = array<i64: 128, 128>}, {pipeline_mode = #tpu.pipeline_mode<synchronous>, transform_indices = @transform_4, window_bounds = array<i64: 1, 128>}, {transform_indices = @transform_5, window_bounds = array<i64: 128, 128>}, {transform_indices = @transform_6, window_bounds = array<i64: 1, 128>}, {transform_indices = @transform_7, window_bounds = array<i64: 64, 128>}]} {
    %c0_i32 = arith.constant 0 : i32
    %0 = arith.cmpi eq, %arg1, %c0_i32 : i32
    %1 = arith.extui %0 : i1 to i32
    %c0_i32_0 = arith.constant 0 : i32
    %2 = arith.cmpi ne, %1, %c0_i32_0 : i32
    scf.if %2 {
      %c0_8 = arith.constant 0 : index
      %c0_9 = arith.constant 0 : index
      %10 = vector.load %arg2[%c0_8, %c0_9] : memref<64x16xf32, #tpu.memory_space<vmem>>, vector<64x16xf32>
      %11 = arith.truncf %10 : vector<64x16xf32> to vector<64x16xbf16>
      %c0_10 = arith.constant 0 : index
      %c0_11 = arith.constant 0 : index
      %12 = vector.load %arg3[%c0_10, %c0_11] : memref<16x128xbf16, #tpu.memory_space<vmem>>, vector<16x128xbf16>
      %c0_12 = arith.constant 0 : index
      %c0_13 = arith.constant 0 : index
      %13 = vector.load %arg4[%c0_12, %c0_13] : memref<1x128xf32, #tpu.memory_space<vmem>>, vector<1x128xf32>
      %cst_14 = arith.constant dense<0.000000e+00> : vector<64x128xf32>
      %14 = tpu.matmul %11, %12, %cst_14 {dimension_numbers = #tpu.dot_dimension_numbers<[1], [0], [0], [1], [0, 0, 1, 1], [], []>} : vector<64x16xbf16>, vector<16x128xbf16>, vector<64x128xf32> -> vector<64x128xf32>
      %15 = vector.broadcast %13 : vector<1x128xf32> to vector<64x128xf32>
      %16 = arith.addf %14, %15 : vector<64x128xf32>
      %cst_15 = arith.constant 0.000000e+00 : f32
      %17 = vector.broadcast %cst_15 : f32 to vector<64x128xf32>
      %18 = arith.maximumf %16, %17 : vector<64x128xf32>
      %19 = arith.truncf %18 : vector<64x128xf32> to vector<64x128xbf16>
      %c0_16 = arith.constant 0 : index
      %c0_17 = arith.constant 0 : index
      %20 = vector.load %arg5[%c0_16, %c0_17] : memref<128x128xbf16, #tpu.memory_space<vmem>>, vector<128x128xbf16>
      %c0_18 = arith.constant 0 : index
      %c0_19 = arith.constant 0 : index
      %21 = vector.load %arg6[%c0_18, %c0_19] : memref<1x128xf32, #tpu.memory_space<vmem>>, vector<1x128xf32>
      %cst_20 = arith.constant dense<0.000000e+00> : vector<64x128xf32>
      %22 = tpu.matmul %19, %20, %cst_20 {dimension_numbers = #tpu.dot_dimension_numbers<[1], [0], [0], [1], [0, 0, 1, 1], [], []>} : vector<64x128xbf16>, vector<128x128xbf16>, vector<64x128xf32> -> vector<64x128xf32>
      %23 = vector.broadcast %21 : vector<1x128xf32> to vector<64x128xf32>
      %24 = arith.addf %22, %23 : vector<64x128xf32>
      %cst_21 = arith.constant 0.000000e+00 : f32
      %25 = vector.broadcast %cst_21 : f32 to vector<64x128xf32>
      %26 = arith.maximumf %24, %25 : vector<64x128xf32>
      %27 = arith.truncf %26 : vector<64x128xf32> to vector<64x128xbf16>
      %c0_22 = arith.constant 0 : index
      %c0_23 = arith.constant 0 : index
      %28 = vector.load %arg10[%c0_22, %c0_23] : memref<64x128xbf16, #tpu.memory_space<vmem>>, vector<64x128xbf16>
      tpu.vector_store %arg10[%c0_22, %c0_23], %27 {strides = array<i32>} : memref<64x128xbf16, #tpu.memory_space<vmem>>, vector<64x128xbf16>,
    } else {
    }
    %c0 = arith.constant 0 : index
    %c0_1 = arith.constant 0 : index
    %3 = vector.load %arg7[%c0, %c0_1] : memref<128x128xbf16, #tpu.memory_space<vmem>>, vector<128x128xbf16>
    %c0_2 = arith.constant 0 : index
    %c0_3 = arith.constant 0 : index
    %4 = vector.load %arg8[%c0_2, %c0_3] : memref<1x128xf32, #tpu.memory_space<vmem>>, vector<1x128xf32>
    %c0_4 = arith.constant 0 : index
    %c0_5 = arith.constant 0 : index
    %5 = vector.load %arg10[%c0_4, %c0_5] : memref<64x128xbf16, #tpu.memory_space<vmem>>, vector<64x128xbf16>
    %cst = arith.constant dense<0.000000e+00> : vector<64x128xf32>
    %6 = tpu.matmul %5, %3, %cst {dimension_numbers = #tpu.dot_dimension_numbers<[1], [0], [0], [1], [0, 0, 1, 1], [], []>} : vector<64x128xbf16>, vector<128x128xbf16>, vector<64x128xf32> -> vector<64x128xf32>
    %7 = vector.broadcast %4 : vector<1x128xf32> to vector<64x128xf32>
    %8 = arith.addf %6, %7 : vector<64x128xf32>
    %c0_6 = arith.constant 0 : index
    %c0_7 = arith.constant 0 : index
    %9 = vector.load %arg9[%c0_6, %c0_7] : memref<64x128xf32, #tpu.memory_space<vmem>>, vector<64x128xf32>
    tpu.vector_store %arg9[%c0_6, %c0_7], %8 {strides = array<i32>} : memref<64x128xf32, #tpu.memory_space<vmem>>, vector<64x128xf32>,
    return
  }
  func.func @transform_0(%arg0: i32, %arg1: i32) -> (i32, i32) {
    %c0_i32 = arith.constant 0 : i32
    %c0_i32_0 = arith.constant 0 : i32
    return %arg0, %c0_i32 : i32, i32
  }
  func.func @transform_1(%arg0: i32, %arg1: i32) -> (i32, i32) {
    %c0_i32 = arith.constant 0 : i32
    %c0_i32_0 = arith.constant 0 : i32
    %c0_i32_1 = arith.constant 0 : i32
    return %c0_i32, %c0_i32_0 : i32, i32
  }
  func.func @transform_2(%arg0: i32, %arg1: i32) -> (i32, i32) {
    %c0_i32 = arith.constant 0 : i32
    %c0_i32_0 = arith.constant 0 : i32
    %c0_i32_1 = arith.constant 0 : i32
    return %c0_i32, %c0_i32_0 : i32, i32
  }
  func.func @transform_3(%arg0: i32, %arg1: i32) -> (i32, i32) {
    %c0_i32 = arith.constant 0 : i32
    %c0_i32_0 = arith.constant 0 : i32
    %c0_i32_1 = arith.constant 0 : i32
    return %c0_i32, %c0_i32_0 : i32, i32
  }
  func.func @transform_4(%arg0: i32, %arg1: i32) -> (i32, i32) {
    %c0_i32 = arith.constant 0 : i32
    %c0_i32_0 = arith.constant 0 : i32
    %c0_i32_1 = arith.constant 0 : i32
    return %c0_i32, %c0_i32_0 : i32, i32
  }
  func.func @transform_5(%arg0: i32, %arg1: i32) -> (i32, i32) {
    %c0_i32 = arith.constant 0 : i32
    %c0_i32_0 = arith.constant 0 : i32
    return %c0_i32, %arg1 : i32, i32
  }
  func.func @transform_6(%arg0: i32, %arg1: i32) -> (i32, i32) {
    %c0_i32 = arith.constant 0 : i32
    %c0_i32_0 = arith.constant 0 : i32
    return %c0_i32, %arg1 : i32, i32
  }
  func.func @transform_7(%arg0: i32, %arg1: i32) -> (i32, i32) {
    %c0_i32 = arith.constant 0 : i32
    return %arg0, %arg1 : i32, i32
  }
}

</mosaic_0001>

<llo_original>
// kernel: tpu_custom_call.1
$region0: #{tpu_custom_call.1}
  #allocation0 [shape = 'u32[]', space=smem, size = 0x4, offset = 0x4, fixed_abs, tag = 'smem constant byte address 0x4 - core index']
  #allocation1 [shape = 'u32[144,128]{1,0:T(1,128)}', space=vmem, size = 0x12000, scoped, tag = 'internal scratch']
  #allocation2 [shape = 'bf16[64,128]{1,0:T(16,128)(2,1)}', space=vmem, size = 0x4000, scoped, tag = 'scratch operand']
  %s0 = inlined_call_operand.vmem [shape: f32[64,16], index: 0, kind: input, shape index: {}]
  %s1 = inlined_call_operand.vmem [shape: bf16[16,128], index: 1, kind: input, shape index: {}]
  %s2 = inlined_call_operand.vmem [shape: f32[1,128], index: 2, kind: input, shape index: {}]
  %s3 = inlined_call_operand.vmem [shape: bf16[128,128], index: 3, kind: input, shape index: {}]
  %s4 = inlined_call_operand.vmem [shape: f32[1,128], index: 4, kind: input, shape index: {}]
  %s5 = inlined_call_operand.hbm [shape: bf16[128,128], index: 5, kind: input, shape index: {}]
  %s6 = inlined_call_operand.vmem [shape: f32[1,128], index: 6, kind: input, shape index: {}]
  %s7 = inlined_call_operand.hbm [shape: f32[64,128], index: 7, kind: output, shape index: {}]
  %s8 = sld [smem:[#allocation0]]
  $region46: #{tpu_custom_call.1} parent=0
    _
  %s10 = ssub.s32 1, %s8
  %s11 = scalar_select 0, %s10, %s8
  $region1: #{tpu_custom_call.1} parent=0
    #allocation3 [shape = 'u8[32768]{0}', space=vmem, size = 0x8000, scoped, tag = 'input window, operand 5, single buffered']
    #allocation4 [shape = 's32[1]{0}', space=sflag, size = 0x4, scoped, tag = 'scoped memory for tpu_custom_call.1']
    #allocation5 [shape = 's32[1]{0}', space=sflag, size = 0x4, scoped, tag = 'scoped memory for tpu_custom_call.1']
    #allocation6 [shape = 'u8[32768]{0}', space=vmem, size = 0x8000, scoped, tag = 'output window, operand 0, single buffered']
    %12 = vsyncpa [#allocation4], 0
    %13 = vsyncpa [#allocation5], 0
    // Predicated region
    $region2: #{tpu_custom_call.1} parent=1 // pred_check
      _
    $region3: #{tpu_custom_call.1} parent=1 // pred_check_branch
      %15 = sbr.rel (0) target = $region5
    $region4: #{tpu_custom_call.1} parent=1 // pred_region
      _
    $region5: #{tpu_custom_call.1} parent=1 // pred_fallthru
      _
    // Predicated region
    $region6: #{tpu_custom_call.1} parent=1 // pred_check
      _
    $region7: #{tpu_custom_call.1} parent=1 // pred_check_branch
      %17 = sbr.rel (0) target = $region9
    $region8: #{tpu_custom_call.1} parent=1 // pred_region
      _
    $region9: #{tpu_custom_call.1} parent=1 // pred_fallthru
      _
    // Predicated region
    $region10: #{tpu_custom_call.1} parent=1 // pred_check
      _
    $region11: #{tpu_custom_call.1} parent=1 // pred_check_branch
      %19 = sbr.rel (0) target = $region13
    $region12: #{tpu_custom_call.1} parent=1 // pred_region
      _
    $region13: #{tpu_custom_call.1} parent=1 // pred_fallthru
      _
    // Predicated region
    $region14: #{tpu_custom_call.1} parent=1 // pred_check
      _
    $region15: #{tpu_custom_call.1} parent=1 // pred_check_branch
      %21 = sbr.rel (0) target = $region17
    $region16: #{tpu_custom_call.1} parent=1 // pred_region
      _
    $region17: #{tpu_custom_call.1} parent=1 // pred_fallthru
      _
    // Predicated region
    $region18: #{tpu_custom_call.1} parent=1 // pred_check
      _
    $region19: #{tpu_custom_call.1} parent=1 // pred_check_branch
      %23 = sbr.rel (0) target = $region21
    $region20: #{tpu_custom_call.1} parent=1 // pred_region
      _
    $region21: #{tpu_custom_call.1} parent=1 // pred_fallthru
      _
    // Predicated region
    $region22: #{tpu_custom_call.1} parent=1 // pred_check
      _
    $region23: #{tpu_custom_call.1} parent=1 // pred_check_branch
      %25 = sbr.rel (0) target = $region25
    $region24: #{tpu_custom_call.1} parent=1 // pred_region
      %s27 = ssub.s32 1024, 1024
      %28 = vsyncadd [#allocation4], %s27
      %s29 = sshll.u32 [#allocation3], 4
      %s30 = int_to_ptr.vmem [resolvable:$true] %s29
      %35 = dma.hbm_to_vmem [thread:$0]  %s5, 1024, %s30, [#allocation4], 64, 64, 4
    $region25: #{tpu_custom_call.1} parent=1 // pred_fallthru
      _
    // Predicated region
    $region26: #{tpu_custom_call.1} parent=1 // pred_check
      _
    $region27: #{tpu_custom_call.1} parent=1 // pred_check_branch
      %37 = sbr.rel (0) target = $region29
    $region28: #{tpu_custom_call.1} parent=1 // pred_region
      _
    $region29: #{tpu_custom_call.1} parent=1 // pred_fallthru
      _
    // Predicated region
    $region30: #{tpu_custom_call.1} parent=1 // pred_check
      _
    $region31: #{tpu_custom_call.1} parent=1 // pred_check_branch
      %39 = sbr.rel (0) target = $region33
    $region32: #{tpu_custom_call.1} parent=1 // pred_region
      %40 = dma.done [#allocation4], 1024
    $region33: #{tpu_custom_call.1} parent=1 // pred_fallthru
      _
    %p42 = scmp.eq.s32.totalorder 0, 0
    // Predicated region
    $region34: #{tpu_custom_call.1} parent=1 // pred_check
      %p43 = pneg %p42
    $region35: #{tpu_custom_call.1} parent=1 // pred_check_branch
      %45 = sbr.rel (%p43) target = $region37
    $region36: #{tpu_custom_call.1} parent=1 // pred_region
      %v46 = vld [vmem:[%s0] sm:$0xff]
      %v47 = vld [vmem:[%s0 + $0x8] sm:$0xff]
      %v48 = vld [vmem:[%s0 + $0x10] sm:$0xff]
      %v49 = vld [vmem:[%s0 + $0x18] sm:$0xff]
      %v50 = vld [vmem:[%s0 + $0x20] sm:$0xff]
      %v51 = vld [vmem:[%s0 + $0x28] sm:$0xff]
      %v52 = vld [vmem:[%s0 + $0x30] sm:$0xff]
      %v53 = vld [vmem:[%s0 + $0x38] sm:$0xff]
      %v54 = vpack.c.bf16 %v47, %v46
      %v55 = vpack.c.bf16 %v49, %v48
      %v56 = vpack.c.bf16 %v51, %v50
      %v57 = vpack.c.bf16 %v53, %v52
      %v58 = vld [vmem:[%s1] sm:$0xf]
      %v59 = vld [vmem:[%s1 + $0x4] sm:$0xf]
      %v60 = vld [vmem:[%s2] sm:$0x1]
      %v62 = vlaneseq
      %v63 = vshrl.u32 %v62, 7
      %v64 = vsub.s32 0, %v63
      %v65 = vrot.slane %v60, %v64
      %v69 = vunpack.c.l.b16 %v58
      %v70 = vunpack.c.l.b16 %v59
      %v71 = vpack.c.b16 %v70, %v69
      %vm73 = vcmask 130048
      %v75 = vsel %vm73, %v54, 0
      %v78 = vsel %vm73, %v55, 0
      %v81 = vsel %vm73, %v56, 0
      %v84 = vsel %vm73, %v57, 0
      %86 = vmatprep.subr.bf16.mxu0 0
      %87 = vmatpush1.bf16.msra.mxu0 %v71
      %88 = vmatprep.subr.bf16.mxu0 0
      %89 = vmatpush1.bf16.msra.mxu0 0
      %90 = vmatprep.subr.bf16.mxu0 0
      %91 = vmatpush1.bf16.msra.mxu0 0
      %92 = vmatprep.subr.bf16.mxu0 0
      %93 = vmatpush1.bf16.msra.mxu0 0
      %94 = vmatprep.subr.bf16.mxu0 0
      %95 = vmatpush1.bf16.msra.mxu0 0
      %96 = vmatprep.subr.bf16.mxu0 0
      %97 = vmatpush1.bf16.msra.mxu0 0
      %98 = vmatprep.subr.bf16.mxu0 0
      %99 = vmatpush1.bf16.msra.mxu0 0
      %100 = vmatprep.subr.bf16.mxu0 0
      %101 = vmatpush1.bf16.msra.mxu0 0
      %102 = vmatprep.subr.bf16.mxu0 0
      %103 = vmatpush1.bf16.msra.mxu0 0
      %104 = vmatprep.subr.bf16.mxu0 0
      %105 = vmatpush1.bf16.msra.mxu0 0
      %106 = vmatprep.subr.bf16.mxu0 0
      %107 = vmatpush1.bf16.msra.mxu0 0
      %108 = vmatprep.subr.bf16.mxu0 0
      %109 = vmatpush1.bf16.msra.mxu0 0
      %110 = vmatprep.subr.bf16.mxu0 0
      %111 = vmatpush1.bf16.msra.mxu0 0
      %112 = vmatprep.subr.bf16.mxu0 0
      %113 = vmatpush1.bf16.msra.mxu0 0
      %114 = vmatprep.subr.bf16.mxu0 0
      %115 = vmatpush1.bf16.msra.mxu0 0
      %116 = vmatprep.subr.bf16.mxu0 0
      %117 = vmatpush1.bf16.msra.mxu0 0
      %118 = vmatprep.mubr.bf16.mxu0 0
      %119 = vmatmul.mubr.bf16.gmra.mrb[0].mxu0 %v75
      %v120 = vpop.f32.mrb[0].mxu0
      %v121 = vadd.f32 %v65, %v120
      %v122 = vpop.f32.mrb[0].mxu0
      %v123 = vpop.f32.mrb[0].mxu0
      %v124 = vadd.f32 %v65, %v123
      %v125 = vpop.f32.mrb[0].mxu0
      %126 = vmatprep.mubr.bf16.mxu0 0
      %127 = vmatmul.mubr.bf16.gmra.mrb[0].mxu0 %v78
      %v128 = vpop.f32.mrb[0].mxu0
      %v129 = vadd.f32 %v65, %v128
      %v130 = vpop.f32.mrb[0].mxu0
      %v131 = vpop.f32.mrb[0].mxu0
      %v132 = vadd.f32 %v65, %v131
      %v133 = vpop.f32.mrb[0].mxu0
      %134 = vmatprep.mubr.bf16.mxu0 0
      %135 = vmatmul.mubr.bf16.gmra.mrb[0].mxu0 %v81
      %v136 = vpop.f32.mrb[0].mxu0
      %v137 = vadd.f32 %v65, %v136
      %v138 = vpop.f32.mrb[0].mxu0
      %v139 = vpop.f32.mrb[0].mxu0
      %v140 = vadd.f32 %v65, %v139
      %v141 = vpop.f32.mrb[0].mxu0
      %142 = vmatprep.mubr.bf16.mxu0 0
      %143 = vmatmul.mubr.bf16.gmra.mrb[0].mxu0 %v84
      %v144 = vpop.f32.mrb[0].mxu0
      %v145 = vadd.f32 %v65, %v144
      %v146 = vpop.f32.mrb[0].mxu0
      %v147 = vpop.f32.mrb[0].mxu0
      %v148 = vadd.f32 %v65, %v147
      %v149 = vpop.f32.mrb[0].mxu0
      %150 = vdwg.mxu0
      %v151 = vmax.f32 %v121, 0.0
      %v152 = vmax.f32 %v124, 0.0
      %v153 = vmax.f32 %v129, 0.0
      %v154 = vmax.f32 %v132, 0.0
      %v155 = vmax.f32 %v137, 0.0
      %v156 = vmax.f32 %v140, 0.0
      %v157 = vmax.f32 %v145, 0.0
      %v158 = vmax.f32 %v148, 0.0
      %v159 = vpack.c.bf16 %v152, %v151
      %v160 = vpack.c.bf16 %v154, %v153
      %v161 = vpack.c.bf16 %v156, %v155
      %v162 = vpack.c.bf16 %v158, %v157
      %v163 = vld [vmem:[%s3] sm:$0xf]
      %v164 = vld [vmem:[%s3 + $0x4] sm:$0xf]
      %v165 = vld [vmem:[%s3 + $0x8] sm:$0xf]
      %v166 = vld [vmem:[%s3 + $0xc] sm:$0xf]
      %v167 = vld [vmem:[%s3 + $0x10] sm:$0xf]
      %v168 = vld [vmem:[%s3 + $0x14] sm:$0xf]
      %v169 = vld [vmem:[%s3 + $0x18] sm:$0xf]
      %v170 = vld [vmem:[%s3 + $0x1c] sm:$0xf]
      %v171 = vld [vmem:[%s3 + $0x20] sm:$0xf]
      %v172 = vld [vmem:[%s3 + $0x24] sm:$0xf]
      %v173 = vld [vmem:[%s3 + $0x28] sm:$0xf]
      %v174 = vld [vmem:[%s3 + $0x2c] sm:$0xf]
      %v175 = vld [vmem:[%s3 + $0x30] sm:$0xf]
      %v176 = vld [vmem:[%s3 + $0x34] sm:$0xf]
      %v177 = vld [vmem:[%s3 + $0x38] sm:$0xf]
      %v178 = vld [vmem:[%s3 + $0x3c] sm:$0xf]
      %v179 = vld [vmem:[%s4] sm:$0x1]
      %v181 = vlaneseq
      %v182 = vshrl.u32 %v181, 7
      %v183 = vsub.s32 0, %v182
      %v184 = vrot.slane %v179, %v183
      %v202 = vunpack.c.l.b16 %v163
      %v203 = vunpack.c.l.b16 %v164
      %v204 = vunpack.c.l.b16 %v165
      %v205 = vunpack.c.l.b16 %v166
      %v206 = vunpack.c.l.b16 %v167
      %v207 = vunpack.c.l.b16 %v168
      %v208 = vunpack.c.l.b16 %v169
      %v209 = vunpack.c.l.b16 %v170
      %v210 = vunpack.c.l.b16 %v171
      %v211 = vunpack.c.l.b16 %v172
      %v212 = vunpack.c.l.b16 %v173
      %v213 = vunpack.c.l.b16 %v174
      %v214 = vunpack.c.l.b16 %v175
      %v215 = vunpack.c.l.b16 %v176
      %v216 = vunpack.c.l.b16 %v177
      %v217 = vunpack.c.l.b16 %v178
      %v218 = vpack.c.b16 %v203, %v202
      %v219 = vpack.c.b16 %v205, %v204
      %v220 = vpack.c.b16 %v207, %v206
      %v221 = vpack.c.b16 %v209, %v208
      %v222 = vpack.c.b16 %v211, %v210
      %v223 = vpack.c.b16 %v213, %v212
      %v224 = vpack.c.b16 %v215, %v214
      %v225 = vpack.c.b16 %v217, %v216
      %234 = vmatprep.subr.bf16.mxu0 0
      %235 = vmatpush1.bf16.msra.mxu0 %v218
      %236 = vmatprep.subr.bf16.mxu0 0
      %237 = vmatpush1.bf16.msra.mxu0 %v219
      %238 = vmatprep.subr.bf16.mxu0 0
      %239 = vmatpush1.bf16.msra.mxu0 %v220
      %240 = vmatprep.subr.bf16.mxu0 0
      %241 = vmatpush1.bf16.msra.mxu0 %v221
      %242 = vmatprep.subr.bf16.mxu0 0
      %243 = vmatpush1.bf16.msra.mxu0 %v222
      %244 = vmatprep.subr.bf16.mxu0 0
      %245 = vmatpush1.bf16.msra.mxu0 %v223
      %246 = vmatprep.subr.bf16.mxu0 0
      %247 = vmatpush1.bf16.msra.mxu0 %v224
      %248 = vmatprep.subr.bf16.mxu0 0
      %249 = vmatpush1.bf16.msra.mxu0 %v225
      %250 = vmatprep.subr.bf16.mxu0 0
      %251 = vmatpush1.bf16.msra.mxu0 0
      %252 = vmatprep.subr.bf16.mxu0 0
      %253 = vmatpush1.bf16.msra.mxu0 0
      %254 = vmatprep.subr.bf16.mxu0 0
      %255 = vmatpush1.bf16.msra.mxu0 0
      %256 = vmatprep.subr.bf16.mxu0 0
      %257 = vmatpush1.bf16.msra.mxu0 0
      %258 = vmatprep.subr.bf16.mxu0 0
      %259 = vmatpush1.bf16.msra.mxu0 0
      %260 = vmatprep.subr.bf16.mxu0 0
      %261 = vmatpush1.bf16.msra.mxu0 0
      %262 = vmatprep.subr.bf16.mxu0 0
      %263 = vmatpush1.bf16.msra.mxu0 0
      %264 = vmatprep.subr.bf16.mxu0 0
      %265 = vmatpush1.bf16.msra.mxu0 0
      %266 = vmatprep.mubr.bf16.mxu0 0
      %267 = vmatmul.mubr.bf16.gmra.mrb[0].mxu0 %v159
      %v268 = vpop.f32.mrb[0].mxu0
      %v269 = vadd.f32 %v184, %v268
      %v270 = vpop.f32.mrb[0].mxu0
      %v271 = vpop.f32.mrb[0].mxu0
      %v272 = vadd.f32 %v184, %v271
      %v273 = vpop.f32.mrb[0].mxu0
      %274 = vmatprep.mubr.bf16.mxu0 0
      %275 = vmatmul.mubr.bf16.gmra.mrb[0].mxu0 %v160
      %v276 = vpop.f32.mrb[0].mxu0
      %v277 = vadd.f32 %v184, %v276
      %v278 = vpop.f32.mrb[0].mxu0
      %v279 = vpop.f32.mrb[0].mxu0
      %v280 = vadd.f32 %v184, %v279
      %v281 = vpop.f32.mrb[0].mxu0
      %282 = vmatprep.mubr.bf16.mxu0 0
      %283 = vmatmul.mubr.bf16.gmra.mrb[0].mxu0 %v161
      %v284 = vpop.f32.mrb[0].mxu0
      %v285 = vadd.f32 %v184, %v284
      %v286 = vpop.f32.mrb[0].mxu0
      %v287 = vpop.f32.mrb[0].mxu0
      %v288 = vadd.f32 %v184, %v287
      %v289 = vpop.f32.mrb[0].mxu0
      %290 = vmatprep.mubr.bf16.mxu0 0
      %291 = vmatmul.mubr.bf16.gmra.mrb[0].mxu0 %v162
      %v292 = vpop.f32.mrb[0].mxu0
      %v293 = vadd.f32 %v184, %v292
      %v294 = vpop.f32.mrb[0].mxu0
      %v295 = vpop.f32.mrb[0].mxu0
      %v296 = vadd.f32 %v184, %v295
      %v297 = vpop.f32.mrb[0].mxu0
      %298 = vdwg.mxu0
      %v299 = vmax.f32 %v269, 0.0
      %v300 = vmax.f32 %v272, 0.0
      %v301 = vmax.f32 %v277, 0.0
      %v302 = vmax.f32 %v280, 0.0
      %v303 = vmax.f32 %v285, 0.0
      %v304 = vmax.f32 %v288, 0.0
      %v305 = vmax.f32 %v293, 0.0
      %v306 = vmax.f32 %v296, 0.0
      %v307 = vpack.c.bf16 %v300, %v299
      %v308 = vpack.c.bf16 %v302, %v301
      %v309 = vpack.c.bf16 %v304, %v303
      %v310 = vpack.c.bf16 %v306, %v305
      %311 = vst [vmem:[#allocation2] sm:$0xff] %v307
      %312 = vst [vmem:[#allocation2 + $0x8] sm:$0xff] %v308
      %313 = vst [vmem:[#allocation2 + $0x10] sm:$0xff] %v309
      %314 = vst [vmem:[#allocation2 + $0x18] sm:$0xff] %v310
    $region37: #{tpu_custom_call.1} parent=1 // pred_fallthru
      _
    %v315 = vld [vmem:[#allocation3] sm:$0xf]
    %v316 = vld [vmem:[#allocation3 + $0x4] sm:$0xf]
    %v317 = vld [vmem:[#allocation3 + $0x8] sm:$0xf]
    %v318 = vld [vmem:[#allocation3 + $0xc] sm:$0xf]
    %v319 = vld [vmem:[#allocation3 + $0x10] sm:$0xf]
    %v320 = vld [vmem:[#allocation3 + $0x14] sm:$0xf]
    %v321 = vld [vmem:[#allocation3 + $0x18] sm:$0xf]
    %v322 = vld [vmem:[#allocation3 + $0x1c] sm:$0xf]
    %v323 = vld [vmem:[#allocation3 + $0x20] sm:$0xf]
    %v324 = vld [vmem:[#allocation3 + $0x24] sm:$0xf]
    %v325 = vld [vmem:[#allocation3 + $0x28] sm:$0xf]
    %v326 = vld [vmem:[#allocation3 + $0x2c] sm:$0xf]
    %v327 = vld [vmem:[#allocation3 + $0x30] sm:$0xf]
    %v328 = vld [vmem:[#allocation3 + $0x34] sm:$0xf]
    %v329 = vld [vmem:[#allocation3 + $0x38] sm:$0xf]
    %v330 = vld [vmem:[#allocation3 + $0x3c] sm:$0xf]
    %v331 = vld [vmem:[%s6] sm:$0x1]
    %v332 = vld [vmem:[#allocation2] sm:$0xff]
    %v333 = vld [vmem:[#allocation2 + $0x8] sm:$0xff]
    %v334 = vld [vmem:[#allocation2 + $0x10] sm:$0xff]
    %v335 = vld [vmem:[#allocation2 + $0x18] sm:$0xff]
    %v337 = vlaneseq
    %v338 = vshrl.u32 %v337, 7
    %v339 = vsub.s32 0, %v338
    %v340 = vrot.slane %v331, %v339
    %v358 = vunpack.c.l.b16 %v315
    %v359 = vunpack.c.l.b16 %v316
    %v360 = vunpack.c.l.b16 %v317
    %v361 = vunpack.c.l.b16 %v318
    %v362 = vunpack.c.l.b16 %v319
    %v363 = vunpack.c.l.b16 %v320
    %v364 = vunpack.c.l.b16 %v321
    %v365 = vunpack.c.l.b16 %v322
    %v366 = vunpack.c.l.b16 %v323
    %v367 = vunpack.c.l.b16 %v324
    %v368 = vunpack.c.l.b16 %v325
    %v369 = vunpack.c.l.b16 %v326
    %v370 = vunpack.c.l.b16 %v327
    %v371 = vunpack.c.l.b16 %v328
    %v372 = vunpack.c.l.b16 %v329
    %v373 = vunpack.c.l.b16 %v330
    %v374 = vpack.c.b16 %v359, %v358
    %v375 = vpack.c.b16 %v361, %v360
    %v376 = vpack.c.b16 %v363, %v362
    %v377 = vpack.c.b16 %v365, %v364
    %v378 = vpack.c.b16 %v367, %v366
    %v379 = vpack.c.b16 %v369, %v368
    %v380 = vpack.c.b16 %v371, %v370
    %v381 = vpack.c.b16 %v373, %v372
    %390 = vmatprep.subr.bf16.mxu0 0
    %391 = vmatpush1.bf16.msra.mxu0 %v374
    %392 = vmatprep.subr.bf16.mxu0 0
    %393 = vmatpush1.bf16.msra.mxu0 %v375
    %394 = vmatprep.subr.bf16.mxu0 0
    %395 = vmatpush1.bf16.msra.mxu0 %v376
    %396 = vmatprep.subr.bf16.mxu0 0
    %397 = vmatpush1.bf16.msra.mxu0 %v377
    %398 = vmatprep.subr.bf16.mxu0 0
    %399 = vmatpush1.bf16.msra.mxu0 %v378
    %400 = vmatprep.subr.bf16.mxu0 0
    %401 = vmatpush1.bf16.msra.mxu0 %v379
    %402 = vmatprep.subr.bf16.mxu0 0
    %403 = vmatpush1.bf16.msra.mxu0 %v380
    %404 = vmatprep.subr.bf16.mxu0 0
    %405 = vmatpush1.bf16.msra.mxu0 %v381
    %406 = vmatprep.subr.bf16.mxu0 0
    %407 = vmatpush1.bf16.msra.mxu0 0
    %408 = vmatprep.subr.bf16.mxu0 0
    %409 = vmatpush1.bf16.msra.mxu0 0
    %410 = vmatprep.subr.bf16.mxu0 0
    %411 = vmatpush1.bf16.msra.mxu0 0
    %412 = vmatprep.subr.bf16.mxu0 0
    %413 = vmatpush1.bf16.msra.mxu0 0
    %414 = vmatprep.subr.bf16.mxu0 0
    %415 = vmatpush1.bf16.msra.mxu0 0
    %416 = vmatprep.subr.bf16.mxu0 0
    %417 = vmatpush1.bf16.msra.mxu0 0
    %418 = vmatprep.subr.bf16.mxu0 0
    %419 = vmatpush1.bf16.msra.mxu0 0
    %420 = vmatprep.subr.bf16.mxu0 0
    %421 = vmatpush1.bf16.msra.mxu0 0
    %422 = vmatprep.mubr.bf16.mxu0 0
    %423 = vmatmul.mubr.bf16.gmra.mrb[0].mxu0 %v332
    %v424 = vpop.f32.mrb[0].mxu0
    %v425 = vadd.f32 %v340, %v424
    %v426 = vpop.f32.mrb[0].mxu0
    %v427 = vpop.f32.mrb[0].mxu0
    %v428 = vadd.f32 %v340, %v427
    %v429 = vpop.f32.mrb[0].mxu0
    %430 = vmatprep.mubr.bf16.mxu0 0
    %431 = vmatmul.mubr.bf16.gmra.mrb[0].mxu0 %v333
    %v432 = vpop.f32.mrb[0].mxu0
    %v433 = vadd.f32 %v340, %v432
    %v434 = vpop.f32.mrb[0].mxu0
    %v435 = vpop.f32.mrb[0].mxu0
    %v436 = vadd.f32 %v340, %v435
    %v437 = vpop.f32.mrb[0].mxu0
    %438 = vmatprep.mubr.bf16.mxu0 0
    %439 = vmatmul.mubr.bf16.gmra.mrb[0].mxu0 %v334
    %v440 = vpop.f32.mrb[0].mxu0
    %v441 = vadd.f32 %v340, %v440
    %v442 = vpop.f32.mrb[0].mxu0
    %v443 = vpop.f32.mrb[0].mxu0
    %v444 = vadd.f32 %v340, %v443
    %v445 = vpop.f32.mrb[0].mxu0
    %446 = vmatprep.mubr.bf16.mxu0 0
    %447 = vmatmul.mubr.bf16.gmra.mrb[0].mxu0 %v335
    %v448 = vpop.f32.mrb[0].mxu0
    %v449 = vadd.f32 %v340, %v448
    %v450 = vpop.f32.mrb[0].mxu0
    %v451 = vpop.f32.mrb[0].mxu0
    %v452 = vadd.f32 %v340, %v451
    %v453 = vpop.f32.mrb[0].mxu0
    %454 = vdwg.mxu0
    %455 = vst [vmem:[#allocation6] sm:$0xff] %v425
    %456 = vst [vmem:[#allocation6 + $0x8] sm:$0xff] %v428
    %457 = vst [vmem:[#allocation6 + $0x10] sm:$0xff] %v433
    %458 = vst [vmem:[#allocation6 + $0x18] sm:$0xff] %v436
    %459 = vst [vmem:[#allocation6 + $0x20] sm:$0xff] %v441
    %460 = vst [vmem:[#allocation6 + $0x28] sm:$0xff] %v444
    %461 = vst [vmem:[#allocation6 + $0x30] sm:$0xff] %v449
    %462 = vst [vmem:[#allocation6 + $0x38] sm:$0xff] %v452
    // Predicated region
    $region38: #{tpu_custom_call.1} parent=1 // pred_check
      _
    $region39: #{tpu_custom_call.1} parent=1 // pred_check_branch
      %464 = sbr.rel (0) target = $region41
    $region40: #{tpu_custom_call.1} parent=1 // pred_region
      %s466 = ssub.s32 1024, 1024
      %467 = vsyncadd [#allocation5], %s466
      %s468 = sshll.u32 [#allocation6], 4
      %s469 = int_to_ptr.vmem [resolvable:$true] %s468
      %474 = dma.vmem_to_hbm [thread:$0]  %s469, 1024, %s7, [#allocation5], 128, 128, 8
    $region41: #{tpu_custom_call.1} parent=1 // pred_fallthru
      _
    // Predicated region
    $region42: #{tpu_custom_call.1} parent=1 // pred_check
      _
    $region43: #{tpu_custom_call.1} parent=1 // pred_check_branch
      %476 = sbr.rel (0) target = $region45
    $region44: #{tpu_custom_call.1} parent=1 // pred_region
      %477 = dma.done [#allocation5], 1024
    $region45: #{tpu_custom_call.1} parent=1 // pred_fallthru
      _
    %478 = vsyncpa [#allocation4], 1
    %479 = vsyncpa [#allocation5], 1

// kernel: tpu_custom_call.1
$region0: #{tpu_custom_call.1}
  #allocation0 [shape = 'u32[]', space=smem, size = 0x4, offset = 0x4, fixed_abs, tag = 'smem constant byte address 0x4 - core index']
  #allocation1 [shape = 'u32[144,128]{1,0:T(1,128)}', space=vmem, size = 0x12000, scoped, tag = 'internal scratch']
  #allocation2 [shape = 'bf16[64,128]{1,0:T(16,128)(2,1)}', space=vmem, size = 0x4000, scoped, tag = 'scratch operand']
  %s0 = inlined_call_operand.vmem [shape: f32[64,16], index: 0, kind: input, shape index: {}]
  %s1 = inlined_call_operand.vmem [shape: bf16[16,128], index: 1, kind: input, shape index: {}]
  %s2 = inlined_call_operand.vmem [shape: f32[1,128], index: 2, kind: input, shape index: {}]
  %s3 = inlined_call_operand.vmem [shape: bf16[128,128], index: 3, kind: input, shape index: {}]
  %s4 = inlined_call_operand.vmem [shape: f32[1,128], index: 4, kind: input, shape index: {}]
  %s5 = inlined_call_operand.hbm [shape: bf16[128,128], index: 5, kind: input, shape index: {}]
  %s6 = inlined_call_operand.vmem [shape: f32[1,128], index: 6, kind: input, shape index: {}]
  %s7 = inlined_call_operand.hbm [shape: f32[64,128], index: 7, kind: output, shape index: {}]
  %s8 = sld [smem:[#allocation0]]
  $region46: #{tpu_custom_call.1} parent=0
    _
  %s10 = ssub.s32 1, %s8
  %s11 = scalar_select 0, %s10, %s8
  $region1: #{tpu_custom_call.1} parent=0
    #allocation3 [shape = 'u8[32768]{0}', space=vmem, size = 0x8000, scoped, tag = 'input window, operand 5, single buffered']
    #allocation4 [shape = 's32[1]{0}', space=sflag, size = 0x4, scoped, tag = 'scoped memory for tpu_custom_call.1']
    #allocation5 [shape = 's32[1]{0}', space=sflag, size = 0x4, scoped, tag = 'scoped memory for tpu_custom_call.1']
    #allocation6 [shape = 'u8[32768]{0}', space=vmem, size = 0x8000, scoped, tag = 'output window, operand 0, single buffered']
    %12 = vsyncpa [#allocation4], 0
    %13 = vsyncpa [#allocation5], 0
    // Predicated region
    $region2: #{tpu_custom_call.1} parent=1 // pred_check
      _
    $region3: #{tpu_custom_call.1} parent=1 // pred_check_branch
      %15 = sbr.rel (0) target = $region5
    $region4: #{tpu_custom_call.1} parent=1 // pred_region
      _
    $region5: #{tpu_custom_call.1} parent=1 // pred_fallthru
      _
    // Predicated region
    $region6: #{tpu_custom_call.1} parent=1 // pred_check
      _
    $region7: #{tpu_custom_call.1} parent=1 // pred_check_branch
      %17 = sbr.rel (0) target = $region9
    $region8: #{tpu_custom_call.1} parent=1 // pred_region
      _
    $region9: #{tpu_custom_call.1} parent=1 // pred_fallthru
      _
    // Predicated region
    $region10: #{tpu_custom_call.1} parent=1 // pred_check
      _
    $region11: #{tpu_custom_call.1} parent=1 // pred_check_branch
      %19 = sbr.rel (0) target = $region13
    $region12: #{tpu_custom_call.1} parent=1 // pred_region
      _
    $region13: #{tpu_custom_call.1} parent=1 // pred_fallthru
      _
    // Predicated region
    $region14: #{tpu_custom_call.1} parent=1 // pred_check
      _
    $region15: #{tpu_custom_call.1} parent=1 // pred_check_branch
      %21 = sbr.rel (0) target = $region17
    $region16: #{tpu_custom_call.1} parent=1 // pred_region
      _
    $region17: #{tpu_custom_call.1} parent=1 // pred_fallthru
      _
    // Predicated region
    $region18: #{tpu_custom_call.1} parent=1 // pred_check
      _
    $region19: #{tpu_custom_call.1} parent=1 // pred_check_branch
      %23 = sbr.rel (0) target = $region21
    $region20: #{tpu_custom_call.1} parent=1 // pred_region
      _
    $region21: #{tpu_custom_call.1} parent=1 // pred_fallthru
      _
    // Predicated region
    $region22: #{tpu_custom_call.1} parent=1 // pred_check
      _
    $region23: #{tpu_custom_call.1} parent=1 // pred_check_branch
      %25 = sbr.rel (0) target = $region25
    $region24: #{tpu_custom_call.1} parent=1 // pred_region
      %s27 = ssub.s32 1024, 1024
      %28 = vsyncadd [#allocation4], %s27
      %s29 = sshll.u32 [#allocation3], 4
      %s30 = int_to_ptr.vmem [resolvable:$true] %s29
      %35 = dma.hbm_to_vmem [thread:$0]  %s5, 1024, %s30, [#allocation4], 64, 64, 4
    $region25: #{tpu_custom_call.1} parent=1 // pred_fallthru
      _
    // Predicated region
    $region26: #{tpu_custom_call.1} parent=1 // pred_check
      _
    $region27: #{tpu_custom_call.1} parent=1 // pred_check_branch
      %37 = sbr.rel (0) target = $region29
    $region28: #{tpu_custom_call.1} parent=1 // pred_region
      _
    $region29: #{tpu_custom_call.1} parent=1 // pred_fallthru
      _
    // Predicated region
    $region30: #{tpu_custom_call.1} parent=1 // pred_check
      _
    $region31: #{tpu_custom_call.1} parent=1 // pred_check_branch
      %39 = sbr.rel (0) target = $region33
    $region32: #{tpu_custom_call.1} parent=1 // pred_region
      %40 = dma.done [#allocation4], 1024
    $region33: #{tpu_custom_call.1} parent=1 // pred_fallthru
      _
    %p42 = scmp.eq.s32.totalorder 0, 0
    // Predicated region
    $region34: #{tpu_custom_call.1} parent=1 // pred_check
      %p43 = pneg %p42
    $region35: #{tpu_custom_call.1} parent=1 // pred_check_branch
      %45 = sbr.rel (%p43) target = $region37
    $region36: #{tpu_custom_call.1} parent=1 // pred_region
      %v46 = vld [vmem:[%s0] sm:$0xff]
      %v47 = vld [vmem:[%s0 + $0x8] sm:$0xff]
      %v48 = vld [vmem:[%s0 + $0x10] sm:$0xff]
      %v49 = vld [vmem:[%s0 + $0x18] sm:$0xff]
      %v50 = vld [vmem:[%s0 + $0x20] sm:$0xff]
      %v51 = vld [vmem:[%s0 + $0x28] sm:$0xff]
      %v52 = vld [vmem:[%s0 + $0x30] sm:$0xff]
      %v53 = vld [vmem:[%s0 + $0x38] sm:$0xff]
      %v54 = vpack.c.bf16 %v47, %v46
      %v55 = vpack.c.bf16 %v49, %v48
      %v56 = vpack.c.bf16 %v51, %v50
      %v57 = vpack.c.bf16 %v53, %v52
      %v58 = vld [vmem:[%s1] sm:$0xf]
      %v59 = vld [vmem:[%s1 + $0x4] sm:$0xf]
      %v60 = vld [vmem:[%s2] sm:$0x1]
      %v62 = vlaneseq
      %v63 = vshrl.u32 %v62, 7
      %v64 = vsub.s32 0, %v63
      %v65 = vrot.slane %v60, %v64
      %v69 = vunpack.c.l.b16 %v58
      %v70 = vunpack.c.l.b16 %v59
      %v71 = vpack.c.b16 %v70, %v69
      %vm73 = vcmask 130048
      %v75 = vsel %vm73, %v54, 0
      %v78 = vsel %vm73, %v55, 0
      %v81 = vsel %vm73, %v56, 0
      %v84 = vsel %vm73, %v57, 0
      %86 = vmatprep.subr.bf16.mxu0 0
      %87 = vmatpush1.bf16.msra.mxu0 %v71
      %88 = vmatprep.subr.bf16.mxu0 0
      %89 = vmatpush1.bf16.msra.mxu0 0
      %90 = vmatprep.subr.bf16.mxu0 0
      %91 = vmatpush1.bf16.msra.mxu0 0
      %92 = vmatprep.subr.bf16.mxu0 0
      %93 = vmatpush1.bf16.msra.mxu0 0
      %94 = vmatprep.subr.bf16.mxu0 0
      %95 = vmatpush1.bf16.msra.mxu0 0
      %96 = vmatprep.subr.bf16.mxu0 0
      %97 = vmatpush1.bf16.msra.mxu0 0
      %98 = vmatprep.subr.bf16.mxu0 0
      %99 = vmatpush1.bf16.msra.mxu0 0
      %100 = vmatprep.subr.bf16.mxu0 0
      %101 = vmatpush1.bf16.msra.mxu0 0
      %102 = vmatprep.subr.bf16.mxu0 0
      %103 = vmatpush1.bf16.msra.mxu0 0
      %104 = vmatprep.subr.bf16.mxu0 0
      %105 = vmatpush1.bf16.msra.mxu0 0
      %106 = vmatprep.subr.bf16.mxu0 0
      %107 = vmatpush1.bf16.msra.mxu0 0
      %108 = vmatprep.subr.bf16.mxu0 0
      %109 = vmatpush1.bf16.msra.mxu0 0
      %110 = vmatprep.subr.bf16.mxu0 0
      %111 = vmatpush1.bf16.msra.mxu0 0
      %112 = vmatprep.subr.bf16.mxu0 0
      %113 = vmatpush1.bf16.msra.mxu0 0
      %114 = vmatprep.subr.bf16.mxu0 0
      %115 = vmatpush1.bf16.msra.mxu0 0
      %116 = vmatprep.subr.bf16.mxu0 0
      %117 = vmatpush1.bf16.msra.mxu0 0
      %118 = vmatprep.mubr.bf16.mxu0 0
      %119 = vmatmul.mubr.bf16.gmra.mrb[0].mxu0 %v75
      %v120 = vpop.f32.mrb[0].mxu0
      %v121 = vadd.f32 %v65, %v120
      %v122 = vpop.f32.mrb[0].mxu0
      %v123 = vpop.f32.mrb[0].mxu0
      %v124 = vadd.f32 %v65, %v123
      %v125 = vpop.f32.mrb[0].mxu0
      %126 = vmatprep.mubr.bf16.mxu0 0
      %127 = vmatmul.mubr.bf16.gmra.mrb[0].mxu0 %v78
      %v128 = vpop.f32.mrb[0].mxu0
      %v129 = vadd.f32 %v65, %v128
      %v130 = vpop.f32.mrb[0].mxu0
      %v131 = vpop.f32.mrb[0].mxu0
      %v132 = vadd.f32 %v65, %v131
      %v133 = vpop.f32.mrb[0].mxu0
      %134 = vmatprep.mubr.bf16.mxu0 0
      %135 = vmatmul.mubr.bf16.gmra.mrb[0].mxu0 %v81
      %v136 = vpop.f32.mrb[0].mxu0
      %v137 = vadd.f32 %v65, %v136
      %v138 = vpop.f32.mrb[0].mxu0
      %v139 = vpop.f32.mrb[0].mxu0
      %v140 = vadd.f32 %v65, %v139
      %v141 = vpop.f32.mrb[0].mxu0
      %142 = vmatprep.mubr.bf16.mxu0 0
      %143 = vmatmul.mubr.bf16.gmra.mrb[0].mxu0 %v84
      %v144 = vpop.f32.mrb[0].mxu0
      %v145 = vadd.f32 %v65, %v144
      %v146 = vpop.f32.mrb[0].mxu0
      %v147 = vpop.f32.mrb[0].mxu0
      %v148 = vadd.f32 %v65, %v147
      %v149 = vpop.f32.mrb[0].mxu0
      %150 = vdwg.mxu0
      %v151 = vmax.f32 %v121, 0.0
      %v152 = vmax.f32 %v124, 0.0
      %v153 = vmax.f32 %v129, 0.0
      %v154 = vmax.f32 %v132, 0.0
      %v155 = vmax.f32 %v137, 0.0
      %v156 = vmax.f32 %v140, 0.0
      %v157 = vmax.f32 %v145, 0.0
      %v158 = vmax.f32 %v148, 0.0
      %v159 = vpack.c.bf16 %v152, %v151
      %v160 = vpack.c.bf16 %v154, %v153
      %v161 = vpack.c.bf16 %v156, %v155
      %v162 = vpack.c.bf16 %v158, %v157
      %v163 = vld [vmem:[%s3] sm:$0xf]
      %v164 = vld [vmem:[%s3 + $0x4] sm:$0xf]
      %v165 = vld [vmem:[%s3 + $0x8] sm:$0xf]
      %v166 = vld [vmem:[%s3 + $0xc] sm:$0xf]
      %v167 = vld [vmem:[%s3 + $0x10] sm:$0xf]
      %v168 = vld [vmem:[%s3 + $0x14] sm:$0xf]
      %v169 = vld [vmem:[%s3 + $0x18] sm:$0xf]
      %v170 = vld [vmem:[%s3 + $0x1c] sm:$0xf]
      %v171 = vld [vmem:[%s3 + $0x20] sm:$0xf]
      %v172 = vld [vmem:[%s3 + $0x24] sm:$0xf]
      %v173 = vld [vmem:[%s3 + $0x28] sm:$0xf]
      %v174 = vld [vmem:[%s3 + $0x2c] sm:$0xf]
      %v175 = vld [vmem:[%s3 + $0x30] sm:$0xf]
      %v176 = vld [vmem:[%s3 + $0x34] sm:$0xf]
      %v177 = vld [vmem:[%s3 + $0x38] sm:$0xf]
      %v178 = vld [vmem:[%s3 + $0x3c] sm:$0xf]
      %v179 = vld [vmem:[%s4] sm:$0x1]
      %v181 = vlaneseq
      %v182 = vshrl.u32 %v181, 7
      %v183 = vsub.s32 0, %v182
      %v184 = vrot.slane %v179, %v183
      %v202 = vunpack.c.l.b16 %v163
      %v203 = vunpack.c.l.b16 %v164
      %v204 = vunpack.c.l.b16 %v165
      %v205 = vunpack.c.l.b16 %v166
      %v206 = vunpack.c.l.b16 %v167
      %v207 = vunpack.c.l.b16 %v168
      %v208 = vunpack.c.l.b16 %v169
      %v209 = vunpack.c.l.b16 %v170
      %v210 = vunpack.c.l.b16 %v171
      %v211 = vunpack.c.l.b16 %v172
      %v212 = vunpack.c.l.b16 %v173
      %v213 = vunpack.c.l.b16 %v174
      %v214 = vunpack.c.l.b16 %v175
      %v215 = vunpack.c.l.b16 %v176
      %v216 = vunpack.c.l.b16 %v177
      %v217 = vunpack.c.l.b16 %v178
      %v218 = vpack.c.b16 %v203, %v202
      %v219 = vpack.c.b16 %v205, %v204
      %v220 = vpack.c.b16 %v207, %v206
      %v221 = vpack.c.b16 %v209, %v208
      %v222 = vpack.c.b16 %v211, %v210
      %v223 = vpack.c.b16 %v213, %v212
      %v224 = vpack.c.b16 %v215, %v214
      %v225 = vpack.c.b16 %v217, %v216
      %234 = vmatprep.subr.bf16.mxu0 0
      %235 = vmatpush1.bf16.msra.mxu0 %v218
      %236 = vmatprep.subr.bf16.mxu0 0
      %237 = vmatpush1.bf16.msra.mxu0 %v219
      %238 = vmatprep.subr.bf16.mxu0 0
      %239 = vmatpush1.bf16.msra.mxu0 %v220
      %240 = vmatprep.subr.bf16.mxu0 0
      %241 = vmatpush1.bf16.msra.mxu0 %v221
      %242 = vmatprep.subr.bf16.mxu0 0
      %243 = vmatpush1.bf16.msra.mxu0 %v222
      %244 = vmatprep.subr.bf16.mxu0 0
      %245 = vmatpush1.bf16.msra.mxu0 %v223
      %246 = vmatprep.subr.bf16.mxu0 0
      %247 = vmatpush1.bf16.msra.mxu0 %v224
      %248 = vmatprep.subr.bf16.mxu0 0
      %249 = vmatpush1.bf16.msra.mxu0 %v225
      %250 = vmatprep.subr.bf16.mxu0 0
      %251 = vmatpush1.bf16.msra.mxu0 0
      %252 = vmatprep.subr.bf16.mxu0 0
      %253 = vmatpush1.bf16.msra.mxu0 0
      %254 = vmatprep.subr.bf16.mxu0 0
      %255 = vmatpush1.bf16.msra.mxu0 0
      %256 = vmatprep.subr.bf16.mxu0 0
      %257 = vmatpush1.bf16.msra.mxu0 0
      %258 = vmatprep.subr.bf16.mxu0 0
      %259 = vmatpush1.bf16.msra.mxu0 0
      %260 = vmatprep.subr.bf16.mxu0 0
      %261 = vmatpush1.bf16.msra.mxu0 0
      %262 = vmatprep.subr.bf16.mxu0 0
      %263 = vmatpush1.bf16.msra.mxu0 0
      %264 = vmatprep.subr.bf16.mxu0 0
      %265 = vmatpush1.bf16.msra.mxu0 0
      %266 = vmatprep.mubr.bf16.mxu0 0
      %267 = vmatmul.mubr.bf16.gmra.mrb[0].mxu0 %v159
      %v268 = vpop.f32.mrb[0].mxu0
      %v269 = vadd.f32 %v184, %v268
      %v270 = vpop.f32.mrb[0].mxu0
      %v271 = vpop.f32.mrb[0].mxu0
      %v272 = vadd.f32 %v184, %v271
      %v273 = vpop.f32.mrb[0].mxu0
      %274 = vmatprep.mubr.bf16.mxu0 0
      %275 = vmatmul.mubr.bf16.gmra.mrb[0].mxu0 %v160
      %v276 = vpop.f32.mrb[0].mxu0
      %v277 = vadd.f32 %v184, %v276
      %v278 = vpop.f32.mrb[0].mxu0
      %v279 = vpop.f32.mrb[0].mxu0
      %v280 = vadd.f32 %v184, %v279
      %v281 = vpop.f32.mrb[0].mxu0
      %282 = vmatprep.mubr.bf16.mxu0 0
      %283 = vmatmul.mubr.bf16.gmra.mrb[0].mxu0 %v161
      %v284 = vpop.f32.mrb[0].mxu0
      %v285 = vadd.f32 %v184, %v284
      %v286 = vpop.f32.mrb[0].mxu0
      %v287 = vpop.f32.mrb[0].mxu0
      %v288 = vadd.f32 %v184, %v287
      %v289 = vpop.f32.mrb[0].mxu0
      %290 = vmatprep.mubr.bf16.mxu0 0
      %291 = vmatmul.mubr.bf16.gmra.mrb[0].mxu0 %v162
      %v292 = vpop.f32.mrb[0].mxu0
      %v293 = vadd.f32 %v184, %v292
      %v294 = vpop.f32.mrb[0].mxu0
      %v295 = vpop.f32.mrb[0].mxu0
      %v296 = vadd.f32 %v184, %v295
      %v297 = vpop.f32.mrb[0].mxu0
      %298 = vdwg.mxu0
      %v299 = vmax.f32 %v269, 0.0
      %v300 = vmax.f32 %v272, 0.0
      %v301 = vmax.f32 %v277, 0.0
      %v302 = vmax.f32 %v280, 0.0
      %v303 = vmax.f32 %v285, 0.0
      %v304 = vmax.f32 %v288, 0.0
      %v305 = vmax.f32 %v293, 0.0
      %v306 = vmax.f32 %v296, 0.0
      %v307 = vpack.c.bf16 %v300, %v299
      %v308 = vpack.c.bf16 %v302, %v301
      %v309 = vpack.c.bf16 %v304, %v303
      %v310 = vpack.c.bf16 %v306, %v305
      %311 = vst [vmem:[#allocation2] sm:$0xff] %v307
      %312 = vst [vmem:[#allocation2 + $0x8] sm:$0xff] %v308
      %313 = vst [vmem:[#allocation2 + $0x10] sm:$0xff] %v309
      %314 = vst [vmem:[#allocation2 + $0x18] sm:$0xff] %v310
    $region37: #{tpu_custom_call.1} parent=1 // pred_fallthru
      _
    %v315 = vld [vmem:[#allocation3] sm:$0xf]
    %v316 = vld [vmem:[#allocation3 + $0x4] sm:$0xf]
    %v317 = vld [vmem:[#allocation3 + $0x8] sm:$0xf]
    %v318 = vld [vmem:[#allocation3 + $0xc] sm:$0xf]
    %v319 = vld [vmem:[#allocation3 + $0x10] sm:$0xf]
    %v320 = vld [vmem:[#allocation3 + $0x14] sm:$0xf]
    %v321 = vld [vmem:[#allocation3 + $0x18] sm:$0xf]
    %v322 = vld [vmem:[#allocation3 + $0x1c] sm:$0xf]
    %v323 = vld [vmem:[#allocation3 + $0x20] sm:$0xf]
    %v324 = vld [vmem:[#allocation3 + $0x24] sm:$0xf]
    %v325 = vld [vmem:[#allocation3 + $0x28] sm:$0xf]
    %v326 = vld [vmem:[#allocation3 + $0x2c] sm:$0xf]
    %v327 = vld [vmem:[#allocation3 + $0x30] sm:$0xf]
    %v328 = vld [vmem:[#allocation3 + $0x34] sm:$0xf]
    %v329 = vld [vmem:[#allocation3 + $0x38] sm:$0xf]
    %v330 = vld [vmem:[#allocation3 + $0x3c] sm:$0xf]
    %v331 = vld [vmem:[%s6] sm:$0x1]
    %v332 = vld [vmem:[#allocation2] sm:$0xff]
    %v333 = vld [vmem:[#allocation2 + $0x8] sm:$0xff]
    %v334 = vld [vmem:[#allocation2 + $0x10] sm:$0xff]
    %v335 = vld [vmem:[#allocation2 + $0x18] sm:$0xff]
    %v337 = vlaneseq
    %v338 = vshrl.u32 %v337, 7
    %v339 = vsub.s32 0, %v338
    %v340 = vrot.slane %v331, %v339
    %v358 = vunpack.c.l.b16 %v315
    %v359 = vunpack.c.l.b16 %v316
    %v360 = vunpack.c.l.b16 %v317
    %v361 = vunpack.c.l.b16 %v318
    %v362 = vunpack.c.l.b16 %v319
    %v363 = vunpack.c.l.b16 %v320
    %v364 = vunpack.c.l.b16 %v321
    %v365 = vunpack.c.l.b16 %v322
    %v366 = vunpack.c.l.b16 %v323
    %v367 = vunpack.c.l.b16 %v324
    %v368 = vunpack.c.l.b16 %v325
    %v369 = vunpack.c.l.b16 %v326
    %v370 = vunpack.c.l.b16 %v327
    %v371 = vunpack.c.l.b16 %v328
    %v372 = vunpack.c.l.b16 %v329
    %v373 = vunpack.c.l.b16 %v330
    %v374 = vpack.c.b16 %v359, %v358
    %v375 = vpack.c.b16 %v361, %v360
    %v376 = vpack.c.b16 %v363, %v362
    %v377 = vpack.c.b16 %v365, %v364
    %v378 = vpack.c.b16 %v367, %v366
    %v379 = vpack.c.b16 %v369, %v368
    %v380 = vpack.c.b16 %v371, %v370
    %v381 = vpack.c.b16 %v373, %v372
    %390 = vmatprep.subr.bf16.mxu0 0
    %391 = vmatpush1.bf16.msra.mxu0 %v374
    %392 = vmatprep.subr.bf16.mxu0 0
    %393 = vmatpush1.bf16.msra.mxu0 %v375
    %394 = vmatprep.subr.bf16.mxu0 0
    %395 = vmatpush1.bf16.msra.mxu0 %v376
    %396 = vmatprep.subr.bf16.mxu0 0
    %397 = vmatpush1.bf16.msra.mxu0 %v377
    %398 = vmatprep.subr.bf16.mxu0 0
    %399 = vmatpush1.bf16.msra.mxu0 %v378
    %400 = vmatprep.subr.bf16.mxu0 0
    %401 = vmatpush1.bf16.msra.mxu0 %v379
    %402 = vmatprep.subr.bf16.mxu0 0
    %403 = vmatpush1.bf16.msra.mxu0 %v380
    %404 = vmatprep.subr.bf16.mxu0 0
    %405 = vmatpush1.bf16.msra.mxu0 %v381
    %406 = vmatprep.subr.bf16.mxu0 0
    %407 = vmatpush1.bf16.msra.mxu0 0
    %408 = vmatprep.subr.bf16.mxu0 0
    %409 = vmatpush1.bf16.msra.mxu0 0
    %410 = vmatprep.subr.bf16.mxu0 0
    %411 = vmatpush1.bf16.msra.mxu0 0
    %412 = vmatprep.subr.bf16.mxu0 0
    %413 = vmatpush1.bf16.msra.mxu0 0
    %414 = vmatprep.subr.bf16.mxu0 0
    %415 = vmatpush1.bf16.msra.mxu0 0
    %416 = vmatprep.subr.bf16.mxu0 0
    %417 = vmatpush1.bf16.msra.mxu0 0
    %418 = vmatprep.subr.bf16.mxu0 0
    %419 = vmatpush1.bf16.msra.mxu0 0
    %420 = vmatprep.subr.bf16.mxu0 0
    %421 = vmatpush1.bf16.msra.mxu0 0
    %422 = vmatprep.mubr.bf16.mxu0 0
    %423 = vmatmul.mubr.bf16.gmra.mrb[0].mxu0 %v332
    %v424 = vpop.f32.mrb[0].mxu0
    %v425 = vadd.f32 %v340, %v424
    %v426 = vpop.f32.mrb[0].mxu0
    %v427 = vpop.f32.mrb[0].mxu0
    %v428 = vadd.f32 %v340, %v427
    %v429 = vpop.f32.mrb[0].mxu0
    %430 = vmatprep.mubr.bf16.mxu0 0
    %431 = vmatmul.mubr.bf16.gmra.mrb[0].mxu0 %v333
    %v432 = vpop.f32.mrb[0].mxu0
    %v433 = vadd.f32 %v340, %v432
    %v434 = vpop.f32.mrb[0].mxu0
    %v435 = vpop.f32.mrb[0].mxu0
    %v436 = vadd.f32 %v340, %v435
    %v437 = vpop.f32.mrb[0].mxu0
    %438 = vmatprep.mubr.bf16.mxu0 0
    %439 = vmatmul.mubr.bf16.gmra.mrb[0].mxu0 %v334
    %v440 = vpop.f32.mrb[0].mxu0
    %v441 = vadd.f32 %v340, %v440
    %v442 = vpop.f32.mrb[0].mxu0
    %v443 = vpop.f32.mrb[0].mxu0
    %v444 = vadd.f32 %v340, %v443
    %v445 = vpop.f32.mrb[0].mxu0
    %446 = vmatprep.mubr.bf16.mxu0 0
    %447 = vmatmul.mubr.bf16.gmra.mrb[0].mxu0 %v335
    %v448 = vpop.f32.mrb[0].mxu0
    %v449 = vadd.f32 %v340, %v448
    %v450 = vpop.f32.mrb[0].mxu0
    %v451 = vpop.f32.mrb[0].mxu0
    %v452 = vadd.f32 %v340, %v451
    %v453 = vpop.f32.mrb[0].mxu0
    %454 = vdwg.mxu0
    %455 = vst [vmem:[#allocation6] sm:$0xff] %v425
    %456 = vst [vmem:[#allocation6 + $0x8] sm:$0xff] %v428
    %457 = vst [vmem:[#allocation6 + $0x10] sm:$0xff] %v433
    %458 = vst [vmem:[#allocation6 + $0x18] sm:$0xff] %v436
    %459 = vst [vmem:[#allocation6 + $0x20] sm:$0xff] %v441
    %460 = vst [vmem:[#allocation6 + $0x28] sm:$0xff] %v444
    %461 = vst [vmem:[#allocation6 + $0x30] sm:$0xff] %v449
    %462 = vst [vmem:[#allocation6 + $0x38] sm:$0xff] %v452
    // Predicated region
    $region38: #{tpu_custom_call.1} parent=1 // pred_check
      _
    $region39: #{tpu_custom_call.1} parent=1 // pred_check_branch
      %464 = sbr.rel (0) target = $region41
    $region40: #{tpu_custom_call.1} parent=1 // pred_region
      %s466 = ssub.s32 1024, 1024
      %467 = vsyncadd [#allocation5], %s466
      %s468 = sshll.u32 [#allocation6], 4
      %s469 = int_to_ptr.vmem [resolvable:$true] %s468
      %474 = dma.vmem_to_hbm [thread:$0]  %s469, 1024, %s7, [#allocation5], 128, 128, 8
    $region41: #{tpu_custom_call.1} parent=1 // pred_fallthru
      _
    // Predicated region
    $region42: #{tpu_custom_call.1} parent=1 // pred_check
      _
    $region43: #{tpu_custom_call.1} parent=1 // pred_check_branch
      %476 = sbr.rel (0) target = $region45
    $region44: #{tpu_custom_call.1} parent=1 // pred_region
      %477 = dma.done [#allocation5], 1024
    $region45: #{tpu_custom_call.1} parent=1 // pred_fallthru
      _
    %478 = vsyncpa [#allocation4], 1
    %479 = vsyncpa [#allocation5], 1

</llo_original>
